<compile_context>
chip_gen: v5e
topology: v5e:2x2
jax: 0.10.0
libtpu: 0.0.40
codegen_flags: <defaults>
</compile_context>

<pallas_src>
import math

import jax
import jax.numpy as jnp
from jax.experimental import pallas as pl
from jax.experimental.pallas import tpu as pltpu


def _pick_tile(dim, prefs):
    for p in prefs:
        if p <= dim and dim % p == 0:
            return p
    return dim  # full dimension is always a legal block


def _vmem_capacity_bytes():
    """Per-core VMEM capacity; conservative (v7x, 64 MiB) fallback if query fails."""
    try:
        cap = getattr(pltpu.get_tpu_info(), "vmem_capacity_bytes", None)
        if cap:
            return int(cap)
    except Exception:
        pass
    return 64 << 20


def _block_vmem_bytes(tm, tn, tk, r, in_isz, xa_isz, out_isz):
    # Double-buffered pipelined blocks + the f32 accumulator scratch.
    buffered = 2 * (tm * tk * in_isz      # x tile
                    + tk * tn * in_isz    # W.T tile
                    + tn * in_isz         # bias tile
                    + tm * r * xa_isz     # xa tile
                    + r * tn * in_isz     # (B[d]*s).T tile
                    + tm * tn * out_isz)  # output tile
    return buffered + 4 * tm * tn         # frozen-path f32 accumulator


def lora_linear_forward(x, w, bias, lora_a, lora_b, *, scaling,
                        tm=None, tn=None, tk=None):
    """x: [B, S, Din], w: [Dout, Din], bias: [Dout],
    lora_a: [r, Din], lora_b: [dup, Dout, r]  ->  [B, S, Dout]."""
    bsz, seq, din = x.shape
    dout, _ = w.shape
    r = lora_a.shape[0]
    dup = lora_b.shape[0]
    assert bsz % dup == 0, "batch must be divisible by dup (as in the PyTorch view)"
    group = bsz // dup
    m_total = group * seq                         # flattened rows per dup-group

    # ---- wrapper-side layout / precompute (once per call, cheap) ------------
    x3 = x.reshape(dup, m_total, din)             # b = d*group + g (matches torch .view)
    bias2d = bias.reshape(1, dout)
    wT = jnp.transpose(w)                         # [Din, Dout]: K on sublanes, N lane-dense
    lbT = (lora_b * scaling).transpose(0, 2, 1)   # [dup, r, Dout], LoRA scaling folded in
    # Hoisted LoRA A-projection (tiny: dup*m_total*r values).  lora_dropout==0
    # means the dropout that would precede this matmul is the identity.
    xa = jnp.einsum("dmi,ri->dmr", x3, lora_a)    # [dup, m_total, r]

    in_isz = jnp.dtype(x.dtype).itemsize
    xa_isz = jnp.dtype(xa.dtype).itemsize
    out_isz = in_isz

    # ---- tile selection ------------------------------------------------------
    # tn/tk: 256-aligned first (fills the 2x256x256 MXU on v6e/v7x; 128 is
    # plenty for v5e's 4x128x128).  tm: as large as possible to cut W
    # re-streaming (arithmetic intensity vs the W stream ~ tm flop/byte).
    if tm is None:
        tm = _pick_tile(m_total, (1024, 512, 256, 128, 64, 32, 16, 8))
    if tn is None:
        tn = _pick_tile(dout, (512, 256, 128))
    if tk is None:
        tk = _pick_tile(din, (512, 256, 128))

    vmem_cap = _vmem_capacity_bytes()
    budget = max(vmem_cap - (16 << 20), 32 << 20)

    # Safety net for the full-dimension fallback: shrink tiles until they fit.
    def _fits(tm_, tn_, tk_):
        return _block_vmem_bytes(tm_, tn_, tk_, r, in_isz, xa_isz, out_isz) <= budget

    while not _fits(tm, tn, tk) and tm % 2 == 0 and tm > 8:
        tm //= 2
    while not _fits(tm, tn, tk) and tk % 2 == 0 and tk > 128:
        tk //= 2
    while not _fits(tm, tn, tk) and tn % 2 == 0 and tn > 128:
        tn //= 2

    assert m_total % tm == 0 and dout % tn == 0 and din % tk == 0
    num_m, num_n, num_k = m_total // tm, dout // tn, din // tk

    # ---- kernel --------------------------------------------------------------
    def kernel(x_ref, wT_ref, b_ref, xa_ref, lbT_ref, o_ref, acc_ref):
        k = pl.program_id(3)

        @pl.when(k == 0)
        def _init():
            acc_ref[...] = jnp.zeros_like(acc_ref)

        # frozen partial: x_tile @ W.T_tile (standard contraction, no in-kernel
        # transpose stealing vector-extended slots from the MXU push).
        acc_ref[...] += jnp.dot(x_ref[0], wT_ref[...],
                                preferred_element_type=jnp.float32)

        @pl.when(k == pl.num_programs(3) - 1)
        def _finalize():
            # LoRA epilogue: (tm, r) @ (r, tn); xa was precomputed in the wrapper.
            lora = jnp.dot(xa_ref[0], lbT_ref[0],
                           preferred_element_type=jnp.float32)
            o_ref[0] = (acc_ref[...] + b_ref[...] + lora).astype(o_ref.dtype)

    grid = (dup, num_m, num_n, num_k)
    in_specs = [
        pl.BlockSpec((1, tm, tk), lambda d, m, n, k: (d, m, k)),   # x
        pl.BlockSpec((tk, tn),    lambda d, m, n, k: (k, n)),      # W.T tile
        pl.BlockSpec((1, tn),     lambda d, m, n, k: (0, n)),      # bias
        pl.BlockSpec((1, tm, r),  lambda d, m, n, k: (d, m, 0)),   # xa = x @ A.T
        pl.BlockSpec((1, r, tn),  lambda d, m, n, k: (d, 0, n)),   # (B[d]*s).T
    ]
    out_specs = pl.BlockSpec((1, tm, tn), lambda d, m, n, k: (d, m, n))

    # NOTE: pipeline_mode=pl.Buffered(3) on the x / W.T specs is a further knob
    # worth sweeping on v6e; default double-buffering is kept here.
    need = _block_vmem_bytes(tm, tn, tk, r, in_isz, xa_isz, out_isz)
    vmem_limit = int(min(max(need + (4 << 20), 32 << 20), budget))

    flops = 2 * dup * m_total * dout * (din + r)
    bytes_accessed = int(
        in_isz * (num_n * x3.size + dup * num_m * w.size + num_m * lbT.size
                  + dup * num_n * bias.size + dup * m_total * dout)
        + xa_isz * xa.size)
    cost = pl.CostEstimate(flops=flops, transcendentals=0,
                           bytes_accessed=bytes_accessed)

    out3 = pl.pallas_call(
        kernel,
        grid_spec=pltpu.PrefetchScalarGridSpec(
            num_scalar_prefetch=0,
            grid=grid,
            in_specs=in_specs,
            out_specs=out_specs,
            scratch_shapes=[pltpu.VMEM((tm, tn), jnp.float32)],
        ),
        out_shape=jax.ShapeDtypeStruct((dup, m_total, dout), x.dtype),
        compiler_params=pltpu.CompilerParams(
            # dup/m/n address independent output blocks (only k carries state
            # via acc_ref), so all three can shard across v7x's 2 TensorCores.
            dimension_semantics=("parallel", "parallel", "parallel", "arbitrary"),
            vmem_limit_bytes=vmem_limit,
        ),
        cost_estimate=cost,
    )(x3, wT, bias2d, xa, lbT)

    return out3.reshape(bsz, seq, dout)


def lora_linear_reference(x, w, bias, lora_a, lora_b, *, scaling):
    bsz, seq, _ = x.shape
    dout = w.shape[0]
    r = lora_a.shape[0]
    dup = lora_b.shape[0]
    frozen = jnp.einsum("bsi,oi->bso", x, w) + bias
    lo = jnp.einsum("bsi,ri->bsr", x, lora_a)                 # x @ A.T
    lo = lo.reshape(dup, bsz // dup, seq, r)
    lo = jnp.einsum("dgsr,dor->dgso", lo, lora_b) * scaling
    return frozen + lo.reshape(bsz, seq, dout)


if __name__ == "__main__":
    # Module hyperparameters (small, but large enough to exercise dup/M/N/K tiling
    # with 256-aligned N/K tiles).
    in_features, out_features = 512, 512
    r, lora_alpha = 8, 16
    n, zo_mode = 2, "single"
    dup = n if zo_mode == "single" else 2 * n
    scaling = lora_alpha / r

    bsz, seq = 4, 64          # bsz divisible by dup; group*seq = 128 rows per dup-group
    dtype = jnp.float32

    key = jax.random.PRNGKey(0)
    kx, kw, kb, ka, kB = jax.random.split(key, 5)

    x = jax.random.normal(kx, (bsz, seq, in_features), dtype=dtype)

    # base_layer = nn.Linear(in_features, out_features): weight [out, in], bias [out]
    bound = 1.0 / math.sqrt(in_features)
    w = jax.random.uniform(kw, (out_features, in_features), dtype=dtype,
                           minval=-bound, maxval=bound)
    bias = jax.random.uniform(kb, (out_features,), dtype=dtype,
                              minval=-bound, maxval=bound)

    # lora_A: kaiming_uniform_(a=sqrt(5)) -> U(-1/sqrt(fan_in), 1/sqrt(fan_in))
    lora_a = jax.random.uniform(ka, (r, in_features), dtype=dtype,
                                minval=-bound, maxval=bound)
    # lora_B is zero-initialized in the module; use small nonzero values here so
    # the LoRA path is actually exercised (deterministic, in-script).
    lora_b = 0.02 * jax.random.normal(kB, (dup, out_features, r), dtype=dtype)

    # Explicit tiles: 256-aligned tn/tk (full MXU width on v6e/v7x) while still
    # giving a multi-step grid (dup=2, num_m=2, num_n=2, num_k=2) at these shapes.
    out = lora_linear_forward(x, w, bias, lora_a, lora_b, scaling=scaling,
                              tm=64, tn=256, tk=256)
    out = jax.block_until_ready(out)

    ref = lora_linear_reference(x, w, bias, lora_a, lora_b, scaling=scaling)
    assert out.shape == (bsz, seq, out_features)
    max_err = float(jnp.max(jnp.abs(out - ref)))
    assert jnp.allclose(out, ref, atol=2e-4, rtol=2e-4), \
        f"mismatch vs reference (max abs err {max_err})"

    print("KERNEL_OK")
</pallas_src>

<mosaic_0001>
module attributes {stable_mosaic.version = 11 : i64} {
  func.func @kernel(%arg0: i32, %arg1: i32, %arg2: i32, %arg3: i32, %arg4: memref<1x64x256xf32, #tpu.memory_space<vmem>>, %arg5: memref<256x256xf32, #tpu.memory_space<vmem>>, %arg6: memref<1x256xf32, #tpu.memory_space<vmem>>, %arg7: memref<1x64x8xf32, #tpu.memory_space<vmem>>, %arg8: memref<1x8x256xf32, #tpu.memory_space<vmem>>, %arg9: memref<1x64x256xf32, #tpu.memory_space<vmem>>, %arg10: memref<64x256xf32, #tpu.memory_space<vmem>>) attributes {dimension_semantics = [#tpu.dimension_semantics<parallel>, #tpu.dimension_semantics<parallel>, #tpu.dimension_semantics<parallel>, #tpu.dimension_semantics<arbitrary>], iteration_bounds = array<i64: 2, 2, 2, 2>, scalar_prefetch = 0 : i64, scratch_operands = 1 : i64, tpu.core_type = #tpu.core_type<tc>, window_params = [{transform_indices = @transform_0, window_bounds = array<i64: 1, 64, 256>}, {transform_indices = @transform_1, window_bounds = array<i64: 256, 256>}, {transform_indices = @transform_2, window_bounds = array<i64: 1, 256>}, {transform_indices = @transform_3, window_bounds = array<i64: 1, 64, 8>}, {transform_indices = @transform_4, window_bounds = array<i64: 1, 8, 256>}, {transform_indices = @transform_5, window_bounds = array<i64: 1, 64, 256>}]} {
    %c0_i32 = arith.constant 0 : i32
    %0 = arith.cmpi eq, %arg3, %c0_i32 : i32
    %1 = arith.extui %0 : i1 to i32
    %c0_i32_0 = arith.constant 0 : i32
    %2 = arith.cmpi ne, %1, %c0_i32_0 : i32
    scf.if %2 {
      %cst_10 = arith.constant 0.000000e+00 : f32
      %13 = vector.broadcast %cst_10 : f32 to vector<64x256xf32>
      %c0_11 = arith.constant 0 : index
      %c0_12 = arith.constant 0 : index
      %14 = vector.load %arg10[%c0_11, %c0_12] : memref<64x256xf32, #tpu.memory_space<vmem>>, vector<64x256xf32>
      tpu.vector_store %arg10[%c0_11, %c0_12], %13 {strides = array<i32>} : memref<64x256xf32, #tpu.memory_space<vmem>>, vector<64x256xf32>,
    } else {
    }
    %c0 = arith.constant 0 : index
    %c0_1 = arith.constant 0 : index
    %3 = vector.load %arg10[%c0, %c0_1] : memref<64x256xf32, #tpu.memory_space<vmem>>, vector<64x256xf32>
    %c0_2 = arith.constant 0 : index
    %c0_3 = arith.constant 0 : index
    %c0_4 = arith.constant 0 : index
    %4 = vector.load %arg4[%c0_2, %c0_3, %c0_4] : memref<1x64x256xf32, #tpu.memory_space<vmem>>, vector<1x64x256xf32>
    %5 = vector.shape_cast %4 : vector<1x64x256xf32> to vector<64x256xf32>
    %c0_5 = arith.constant 0 : index
    %c0_6 = arith.constant 0 : index
    %6 = vector.load %arg5[%c0_5, %c0_6] : memref<256x256xf32, #tpu.memory_space<vmem>>, vector<256x256xf32>
    %cst = arith.constant dense<0.000000e+00> : vector<64x256xf32>
    %7 = tpu.matmul %5, %6, %cst {dimension_numbers = #tpu.dot_dimension_numbers<[1], [0], [0], [1], [0, 0, 1, 1], [], []>} : vector<64x256xf32>, vector<256x256xf32>, vector<64x256xf32> -> vector<64x256xf32>
    %8 = arith.addf %3, %7 : vector<64x256xf32>
    %c0_7 = arith.constant 0 : index
    %c0_8 = arith.constant 0 : index
    %9 = vector.load %arg10[%c0_7, %c0_8] : memref<64x256xf32, #tpu.memory_space<vmem>>, vector<64x256xf32>
    tpu.vector_store %arg10[%c0_7, %c0_8], %8 {strides = array<i32>} : memref<64x256xf32, #tpu.memory_space<vmem>>, vector<64x256xf32>,
    %c1_i32 = arith.constant 1 : i32
    %10 = arith.cmpi eq, %arg3, %c1_i32 : i32
    %11 = arith.extui %10 : i1 to i32
    %c0_i32_9 = arith.constant 0 : i32
    %12 = arith.cmpi ne, %11, %c0_i32_9 : i32
    scf.if %12 {
      %c0_10 = arith.constant 0 : index
      %c0_11 = arith.constant 0 : index
      %c0_12 = arith.constant 0 : index
      %13 = vector.load %arg7[%c0_10, %c0_11, %c0_12] : memref<1x64x8xf32, #tpu.memory_space<vmem>>, vector<1x64x8xf32>
      %14 = vector.shape_cast %13 : vector<1x64x8xf32> to vector<64x8xf32>
      %c0_13 = arith.constant 0 : index
      %c0_14 = arith.constant 0 : index
      %c0_15 = arith.constant 0 : index
      %15 = vector.load %arg8[%c0_13, %c0_14, %c0_15] : memref<1x8x256xf32, #tpu.memory_space<vmem>>, vector<1x8x256xf32>
      %16 = vector.shape_cast %15 : vector<1x8x256xf32> to vector<8x256xf32>
      %cst_16 = arith.constant dense<0.000000e+00> : vector<64x256xf32>
      %17 = tpu.matmul %14, %16, %cst_16 {dimension_numbers = #tpu.dot_dimension_numbers<[1], [0], [0], [1], [0, 0, 1, 1], [], []>} : vector<64x8xf32>, vector<8x256xf32>, vector<64x256xf32> -> vector<64x256xf32>
      %c0_17 = arith.constant 0 : index
      %c0_18 = arith.constant 0 : index
      %18 = vector.load %arg10[%c0_17, %c0_18] : memref<64x256xf32, #tpu.memory_space<vmem>>, vector<64x256xf32>
      %c0_19 = arith.constant 0 : index
      %c0_20 = arith.constant 0 : index
      %19 = vector.load %arg6[%c0_19, %c0_20] : memref<1x256xf32, #tpu.memory_space<vmem>>, vector<1x256xf32>
      %20 = vector.broadcast %19 : vector<1x256xf32> to vector<64x256xf32>
      %21 = arith.addf %18, %20 : vector<64x256xf32>
      %22 = arith.addf %21, %17 : vector<64x256xf32>
      %c0_21 = arith.constant 0 : index
      %c0_22 = arith.constant 0 : index
      %c0_23 = arith.constant 0 : index
      %23 = vector.load %arg9[%c0_21, %c0_22, %c0_23] : memref<1x64x256xf32, #tpu.memory_space<vmem>>, vector<1x64x256xf32>
      %24 = vector.shape_cast %23 : vector<1x64x256xf32> to vector<64x256xf32>
      %25 = vector.shape_cast %22 : vector<64x256xf32> to vector<1x64x256xf32>
      tpu.vector_store %arg9[%c0_21, %c0_22, %c0_23], %25 {strides = array<i32>} : memref<1x64x256xf32, #tpu.memory_space<vmem>>, vector<1x64x256xf32>,
    } else {
    }
    return
  }
  func.func @transform_0(%arg0: i32, %arg1: i32, %arg2: i32, %arg3: i32) -> (i32, i32, i32) {
    %c0_i32 = arith.constant 0 : i32
    return %arg0, %arg1, %arg3 : i32, i32, i32
  }
  func.func @transform_1(%arg0: i32, %arg1: i32, %arg2: i32, %arg3: i32) -> (i32, i32) {
    %c0_i32 = arith.constant 0 : i32
    return %arg3, %arg2 : i32, i32
  }
  func.func @transform_2(%arg0: i32, %arg1: i32, %arg2: i32, %arg3: i32) -> (i32, i32) {
    %c0_i32 = arith.constant 0 : i32
    %c0_i32_0 = arith.constant 0 : i32
    return %c0_i32, %arg2 : i32, i32
  }
  func.func @transform_3(%arg0: i32, %arg1: i32, %arg2: i32, %arg3: i32) -> (i32, i32, i32) {
    %c0_i32 = arith.constant 0 : i32
    %c0_i32_0 = arith.constant 0 : i32
    return %arg0, %arg1, %c0_i32 : i32, i32, i32
  }
  func.func @transform_4(%arg0: i32, %arg1: i32, %arg2: i32, %arg3: i32) -> (i32, i32, i32) {
    %c0_i32 = arith.constant 0 : i32
    %c0_i32_0 = arith.constant 0 : i32
    return %arg0, %c0_i32, %arg2 : i32, i32, i32
  }
  func.func @transform_5(%arg0: i32, %arg1: i32, %arg2: i32, %arg3: i32) -> (i32, i32, i32) {
    %c0_i32 = arith.constant 0 : i32
    return %arg0, %arg1, %arg2 : i32, i32, i32
  }
}

</mosaic_0001>

<llo_original>
// kernel: tpu_custom_call.1
$region0: #{tpu_custom_call.1}
  #allocation0 [shape = 'u32[]', space=smem, size = 0x4, offset = 0x4, fixed_abs, tag = 'smem constant byte address 0x4 - core index']
  #allocation1 [shape = 'u32[72,128]{1,0:T(1,128)}', space=vmem, size = 0x9000, scoped, tag = 'internal scratch']
  #allocation2 [shape = 'f32[64,256]{1,0:T(8,128)}', space=vmem, size = 0x10000, scoped, tag = 'scratch operand']
  %s0 = inlined_call_operand.hbm [shape: f32[2,128,512], index: 0, kind: input, shape index: {}]
  %s1 = inlined_call_operand.hbm [shape: f32[512,512], index: 1, kind: input, shape index: {}]
  %s2 = inlined_call_operand.vmem [shape: f32[1,512], index: 2, kind: input, shape index: {}]
  %s3 = inlined_call_operand.vmem [shape: f32[2,128,8], index: 3, kind: input, shape index: {}]
  %s4 = inlined_call_operand.vmem [shape: f32[2,8,512], index: 4, kind: input, shape index: {}]
  %s5 = inlined_call_operand.hbm [shape: f32[2,128,512], index: 5, kind: output, shape index: {}]
  %s6 = sld [smem:[#allocation0]]
  $region69: #{tpu_custom_call.1} parent=0
    _
  %s8 = ssub.s32 1, %s6
  %s9 = scalar_select 0, %s8, %s6
  $region1: #{tpu_custom_call.1} parent=0
    #allocation3 [shape = 'u8[131072]{0}', space=vmem, size = 0x20000, scoped, tag = 'input window, operand 0']
    #allocation4 [shape = 's32[2]{0}', space=sflag, size = 0x8, scoped, tag = 'scoped memory for tpu_custom_call.1']
    #allocation5 [shape = 's32[2]{0}', space=sflag, size = 0x8, scoped, tag = 'scoped memory for tpu_custom_call.1']
    #allocation6 [shape = 'u8[524288]{0}', space=vmem, size = 0x80000, scoped, tag = 'input window, operand 1']
    #allocation7 [shape = 's32[2]{0}', space=sflag, size = 0x8, scoped, tag = 'scoped memory for tpu_custom_call.1']
    #allocation8 [shape = 'u8[131072]{0}', space=vmem, size = 0x20000, scoped, tag = 'output window, operand 0']
    %10 = vsyncpa [#allocation4], 0
    %s11 = scalar_lea.sflag [#allocation4], 1
    %12 = vsyncpa %s11, 0
    %13 = vsyncpa [#allocation7], 0
    %s14 = scalar_lea.sflag [#allocation7], 1
    %15 = vsyncpa %s14, 0
    %16 = vsyncpa [#allocation5], 0
    %s17 = scalar_lea.sflag [#allocation5], 1
    %18 = vsyncpa %s17, 0
    loop: start=0, step=1, limit=18
    $region2: #{tpu_custom_call.1} parent=1 // loop_pre_header
      _
    $region3: #{tpu_custom_call.1} parent=1 // loop_header
      %s20 = sphi 0, %s24
      %p21 = scmp.ge.s32.totalorder %s20, 18
      %s27 = sphi 0, %s53
      %s28 = sphi 0, %s49
      %s29 = sphi 0, %s45
      %s30 = sphi 0, %s41
      %s31 = sphi 0, %s27
      %s32 = sphi 0, %s28
      %s33 = sphi 0, %s29
      %s34 = sphi 0, %s30
      %s35 = sphi 0, %s31
      %s36 = sphi 0, %s32
      %s37 = sphi 0, %s33
      %s38 = sphi 0, %s34
      %s60 = sphi 0, %s62
      %s63 = sphi 0, %s60
      %s64 = sphi 0, %s63
      %s80 = sphi 0, %s64
      %s88 = sphi 0, %s90
      %s91 = sphi 0, %s88
      %s92 = sphi 0, %s91
      %s108 = sphi 0, %s92
      %s114 = sphi 0, %s116
      %s117 = sphi 0, %s114
      %s118 = sphi 0, %s117
      %s134 = sphi 0, %s118
      %s142 = sphi 0, %s144
      %s145 = sphi 0, %s142
      %s146 = sphi 0, %s145
      %s162 = sphi 0, %s146
      %s170 = sphi 0, %s172
      %s173 = sphi 0, %s170
      %s174 = sphi 0, %s173
      %s190 = sphi 0, %s174
      %s200 = sphi 0, %s202
      %s203 = sphi 0, %s200
      %s204 = sphi 0, %s203
      %s220 = sphi 0, %s204
    $region4: #{tpu_custom_call.1} parent=1 // loop_header_branch
      %23 = sbr.rel (%p21) target = $region8
    $region5: #{tpu_custom_call.1} parent=1 // loop_body
      %s25 = ssub.s32 %s20, 1
      %s26 = ssub.s32 %s20, 2
      %s39 = sadd.s32 1, %s30
      %p40 = scmp.ge.s32.totalorder %s39, 2
      %s41 = scalar_select %p40, 0, %s39
      %s42 = sadd.s32 1, %s29
      %s43 = scalar_select %p40, %s42, %s29
      %p44 = scmp.ge.s32.totalorder %s43, 2
      %s45 = scalar_select %p44, 0, %s43
      %s46 = sadd.s32 1, %s28
      %s47 = scalar_select %p44, %s46, %s28
      %p48 = scmp.ge.s32.totalorder %s47, 2
      %s49 = scalar_select %p48, 0, %s47
      %s50 = sadd.s32 1, %s27
      %s51 = scalar_select %p48, %s50, %s27
      %p52 = scmp.ge.s32.totalorder %s51, 2
      %s53 = scalar_select %p52, 0, %s51
      %s54 = ssub.s32 %s27, %s53
      %s55 = ssub.s32 %s28, %s49
      %s56 = sor.u32 %s54, %s55
      %s57 = ssub.s32 %s30, %s41
      %s58 = sor.u32 %s56, %s57
      %p59 = scmp.eq.s32.totalorder %s58, 0
      %s61 = sadd.s32 %s60, 1
      %s62 = scalar_select %p59, %s60, %s61
      %p65 = pneg %p59
      %p66 = scmp.eq.s32.totalorder %s20, 15
      %p67 = por %p65, %p66
      %p68 = scmp.ne.s32.totalorder %s60, %s63
      %p69 = scmp.eq.s32.totalorder %s20, 0
      %p70 = por %p68, %p69
      %p71 = scmp.ne.s32.totalorder %s60, %s63
      %p72 = scmp.eq.s32.totalorder %s25, 15
      %p73 = por %p71, %p72
      %p74 = scmp.ne.s32.totalorder %s63, %s64
      %p75 = scmp.eq.s32.totalorder %s25, 0
      %p76 = por %p74, %p75
      %p77 = scmp.ne.s32.totalorder %s63, %s64
      %p78 = scmp.eq.s32.totalorder %s26, 15
      %p79 = por %p77, %p78
      %p81 = scmp.ne.s32.totalorder %s64, %s80
      %p82 = scmp.eq.s32.totalorder %s26, 0
      %p83 = por %p81, %p82
      %s84 = ssub.s32 %s30, %s41
      %s85 = ssub.s32 %s29, %s45
      %s86 = sor.u32 %s84, %s85
      %p87 = scmp.eq.s32.totalorder %s86, 0
      %s89 = sadd.s32 %s88, 1
      %s90 = scalar_select %p87, %s88, %s89
      %p93 = pneg %p87
      %p94 = scmp.eq.s32.totalorder %s20, 15
      %p95 = por %p93, %p94
      %p96 = scmp.ne.s32.totalorder %s88, %s91
      %p97 = scmp.eq.s32.totalorder %s20, 0
      %p98 = por %p96, %p97
      %p99 = scmp.ne.s32.totalorder %s88, %s91
      %p100 = scmp.eq.s32.totalorder %s25, 15
      %p101 = por %p99, %p100
      %p102 = scmp.ne.s32.totalorder %s91, %s92
      %p103 = scmp.eq.s32.totalorder %s25, 0
      %p104 = por %p102, %p103
      %p105 = scmp.ne.s32.totalorder %s91, %s92
      %p106 = scmp.eq.s32.totalorder %s26, 15
      %p107 = por %p105, %p106
      %p109 = scmp.ne.s32.totalorder %s92, %s108
      %p110 = scmp.eq.s32.totalorder %s26, 0
      %p111 = por %p109, %p110
      %s112 = ssub.s32 %s29, %s45
      %p113 = scmp.eq.s32.totalorder %s112, 0
      %s115 = sadd.s32 %s114, 1
      %s116 = scalar_select %p113, %s114, %s115
      %p119 = pneg %p113
      %p120 = scmp.eq.s32.totalorder %s20, 15
      %p121 = por %p119, %p120
      %p122 = scmp.ne.s32.totalorder %s114, %s117
      %p123 = scmp.eq.s32.totalorder %s20, 0
      %p124 = por %p122, %p123
      %p125 = scmp.ne.s32.totalorder %s114, %s117
      %p126 = scmp.eq.s32.totalorder %s25, 15
      %p127 = por %p125, %p126
      %p128 = scmp.ne.s32.totalorder %s117, %s118
      %p129 = scmp.eq.s32.totalorder %s25, 0
      %p130 = por %p128, %p129
      %p131 = scmp.ne.s32.totalorder %s117, %s118
      %p132 = scmp.eq.s32.totalorder %s26, 15
      %p133 = por %p131, %p132
      %p135 = scmp.ne.s32.totalorder %s118, %s134
      %p136 = scmp.eq.s32.totalorder %s26, 0
      %p137 = por %p135, %p136
      %s138 = ssub.s32 %s27, %s53
      %s139 = ssub.s32 %s28, %s49
      %s140 = sor.u32 %s138, %s139
      %p141 = scmp.eq.s32.totalorder %s140, 0
      %s143 = sadd.s32 %s142, 1
      %s144 = scalar_select %p141, %s142, %s143
      %p147 = pneg %p141
      %p148 = scmp.eq.s32.totalorder %s20, 15
      %p149 = por %p147, %p148
      %p150 = scmp.ne.s32.totalorder %s142, %s145
      %p151 = scmp.eq.s32.totalorder %s20, 0
      %p152 = por %p150, %p151
      %p153 = scmp.ne.s32.totalorder %s142, %s145
      %p154 = scmp.eq.s32.totalorder %s25, 15
      %p155 = por %p153, %p154
      %p156 = scmp.ne.s32.totalorder %s145, %s146
      %p157 = scmp.eq.s32.totalorder %s25, 0
      %p158 = por %p156, %p157
      %p159 = scmp.ne.s32.totalorder %s145, %s146
      %p160 = scmp.eq.s32.totalorder %s26, 15
      %p161 = por %p159, %p160
      %p163 = scmp.ne.s32.totalorder %s146, %s162
      %p164 = scmp.eq.s32.totalorder %s26, 0
      %p165 = por %p163, %p164
      %s166 = ssub.s32 %s27, %s53
      %s167 = ssub.s32 %s29, %s45
      %s168 = sor.u32 %s166, %s167
      %p169 = scmp.eq.s32.totalorder %s168, 0
      %s171 = sadd.s32 %s170, 1
      %s172 = scalar_select %p169, %s170, %s171
      %p175 = pneg %p169
      %p176 = scmp.eq.s32.totalorder %s20, 15
      %p177 = por %p175, %p176
      %p178 = scmp.ne.s32.totalorder %s170, %s173
      %p179 = scmp.eq.s32.totalorder %s20, 0
      %p180 = por %p178, %p179
      %p181 = scmp.ne.s32.totalorder %s170, %s173
      %p182 = scmp.eq.s32.totalorder %s25, 15
      %p183 = por %p181, %p182
      %p184 = scmp.ne.s32.totalorder %s173, %s174
      %p185 = scmp.eq.s32.totalorder %s25, 0
      %p186 = por %p184, %p185
      %p187 = scmp.ne.s32.totalorder %s173, %s174
      %p188 = scmp.eq.s32.totalorder %s26, 15
      %p189 = por %p187, %p188
      %p191 = scmp.ne.s32.totalorder %s174, %s190
      %p192 = scmp.eq.s32.totalorder %s26, 0
      %p193 = por %p191, %p192
      %s194 = ssub.s32 %s27, %s53
      %s195 = ssub.s32 %s28, %s49
      %s196 = sor.u32 %s194, %s195
      %s197 = ssub.s32 %s29, %s45
      %s198 = sor.u32 %s196, %s197
      %p199 = scmp.eq.s32.totalorder %s198, 0
      %s201 = sadd.s32 %s200, 1
      %s202 = scalar_select %p199, %s200, %s201
      %p205 = pneg %p199
      %p206 = scmp.eq.s32.totalorder %s20, 15
      %p207 = por %p205, %p206
      %p208 = scmp.ne.s32.totalorder %s200, %s203
      %p209 = scmp.eq.s32.totalorder %s20, 0
      %p210 = por %p208, %p209
      %p211 = scmp.ne.s32.totalorder %s200, %s203
      %p212 = scmp.eq.s32.totalorder %s25, 15
      %p213 = por %p211, %p212
      %p214 = scmp.ne.s32.totalorder %s203, %s204
      %p215 = scmp.eq.s32.totalorder %s25, 0
      %p216 = por %p214, %p215
      %p217 = scmp.ne.s32.totalorder %s203, %s204
      %p218 = scmp.eq.s32.totalorder %s26, 15
      %p219 = por %p217, %p218
      %p221 = scmp.ne.s32.totalorder %s204, %s220
      %p222 = scmp.eq.s32.totalorder %s26, 0
      %p223 = por %p221, %p222
      %p224 = scmp.le.s32.totalorder 1, %s20
      %p225 = scmp.lt.s32.totalorder %s20, 17
      %p226 = pnand %p224, %p225
      %p227 = pneg %p226
      // Predicated region
      $region9: #{tpu_custom_call.1} parent=5 // pred_check
        _
      $region10: #{tpu_custom_call.1} parent=5 // pred_check_branch
        %229 = sbr.rel (%p226) target = $region12
      $region11: #{tpu_custom_call.1} parent=5 // pred_region
        %s230 = ssub.s32 %s20, 1
      $region12: #{tpu_custom_call.1} parent=5 // pred_fallthru
        _
      %p231 = scmp.lt.s32.totalorder %s20, 16
      // Predicated region
      $region13: #{tpu_custom_call.1} parent=5 // pred_check
        %p232 = pneg %p231
      $region14: #{tpu_custom_call.1} parent=5 // pred_check_branch
        %234 = sbr.rel (%p232) target = $region16
      $region15: #{tpu_custom_call.1} parent=5 // pred_region
        // Predicated region
        $region17: #{tpu_custom_call.1} parent=15 // pred_check
          %p235 = pneg %p70
        $region18: #{tpu_custom_call.1} parent=15 // pred_check_branch
          %237 = sbr.rel (%p235) target = $region20
        $region19: #{tpu_custom_call.1} parent=15 // pred_region
          %s238 = sand.u32 %s60, 1
          %s239 = scalar_lea.sflag [#allocation4], %s238
          %s240 = sand.u32 %s60, 1
          %s241 = smul.addr %s240, 128
          %s242 = scalar_lea.vmem [#allocation3], %s241
          %s243 = smul.u32 8, %s28
          %s244 = smul.u32 2, %s30
          %246 = vsyncadd %s239, 0
          %s247 = smul.addr %s243, 4
          %s248 = sadd.s32 %s244, %s247
          %s249 = smul.addr %s27, 64
          %s250 = sadd.s32 %s248, %s249
          %s251 = smul.addr %s250, 8
          %s252 = scalar_lea.hbm %s0, %s251
          %s253 = sshll.u32 %s252, 4
          %s254 = int_to_ptr.hbm [resolvable:$true] %s253
          %s255 = sshll.u32 %s242, 4
          %s256 = int_to_ptr.vmem [resolvable:$true] %s255
          %261 = dma.hbm_to_vmem [thread:$0]  %s254, 2048, %s256, %s239, 512, 256, 16
        $region20: #{tpu_custom_call.1} parent=15 // pred_fallthru
          _
        // Predicated region
        $region21: #{tpu_custom_call.1} parent=15 // pred_check
          %p262 = pneg %p98
        $region22: #{tpu_custom_call.1} parent=15 // pred_check_branch
          %264 = sbr.rel (%p262) target = $region24
        $region23: #{tpu_custom_call.1} parent=15 // pred_region
          %s265 = sand.u32 %s88, 1
          %s266 = scalar_lea.sflag [#allocation7], %s265
          %s267 = sand.u32 %s88, 1
          %s268 = smul.addr %s267, 512
          %s269 = scalar_lea.vmem [#allocation6], %s268
          %s270 = smul.u32 32, %s30
          %s271 = smul.u32 2, %s29
          %273 = vsyncadd %s266, 0
          %s274 = smul.addr %s270, 4
          %s275 = sadd.s32 %s271, %s274
          %s276 = smul.addr %s275, 8
          %s277 = scalar_lea.hbm %s1, %s276
          %s278 = sshll.u32 %s277, 4
          %s279 = int_to_ptr.hbm [resolvable:$true] %s278
          %s280 = sshll.u32 %s269, 4
          %s281 = int_to_ptr.vmem [resolvable:$true] %s280
          %286 = dma.hbm_to_vmem [thread:$0]  %s279, 8192, %s281, %s266, 512, 256, 16
        $region24: #{tpu_custom_call.1} parent=15 // pred_fallthru
          _
        // Predicated region
        $region25: #{tpu_custom_call.1} parent=15 // pred_check
          %p287 = pneg %p124
        $region26: #{tpu_custom_call.1} parent=15 // pred_check_branch
          %289 = sbr.rel (%p287) target = $region28
        $region27: #{tpu_custom_call.1} parent=15 // pred_region
          %s290 = smul.u32 2, %s29
          %p291 = scmp.lt.s32.totalorder %s290, 3
          %s292 = scalar_select %p291, %s290, 3
          %s293 = scalar_lea.vmem %s2, %s292
          %s294 = smul.u32 2, %s29
        $region28: #{tpu_custom_call.1} parent=15 // pred_fallthru
          _
        // Predicated region
        $region29: #{tpu_custom_call.1} parent=15 // pred_check
          %p295 = pneg %p152
        $region30: #{tpu_custom_call.1} parent=15 // pred_check_branch
          %297 = sbr.rel (%p295) target = $region32
        $region31: #{tpu_custom_call.1} parent=15 // pred_region
          %s298 = smul.u32 8, %s28
          %p299 = scmp.lt.s32.totalorder %s27, 1
          %s300 = scalar_select %p299, %s27, 1
          %p301 = scmp.lt.s32.totalorder %s298, 15
          %s302 = scalar_select %p301, %s298, 15
          %s303 = smul.addr %s300, 16
          %s304 = sadd.s32 %s302, %s303
          %s305 = smul.addr %s304, 8
          %s306 = scalar_lea.vmem %s3, %s305
          %s307 = smul.u32 8, %s28
        $region32: #{tpu_custom_call.1} parent=15 // pred_fallthru
          _
        // Predicated region
        $region33: #{tpu_custom_call.1} parent=15 // pred_check
          %p308 = pneg %p180
        $region34: #{tpu_custom_call.1} parent=15 // pred_check_branch
          %310 = sbr.rel (%p308) target = $region36
        $region35: #{tpu_custom_call.1} parent=15 // pred_region
          %s311 = smul.u32 2, %s29
          %p312 = scmp.lt.s32.totalorder %s27, 1
          %s313 = scalar_select %p312, %s27, 1
          %p314 = scmp.lt.s32.totalorder %s311, 3
          %s315 = scalar_select %p314, %s311, 3
          %s316 = smul.addr %s313, 4
          %s317 = sadd.s32 %s315, %s316
          %s318 = smul.addr %s317, 8
          %s319 = scalar_lea.vmem %s4, %s318
          %s320 = smul.u32 2, %s29
        $region36: #{tpu_custom_call.1} parent=15 // pred_fallthru
          _
      $region16: #{tpu_custom_call.1} parent=5 // pred_fallthru
        _
      %p321 = scmp.le.s32.totalorder 1, %s20
      %p322 = scmp.lt.s32.totalorder %s20, 17
      %p323 = pnand %p321, %p322
      %p324 = pneg %p323
      // Predicated region
      $region37: #{tpu_custom_call.1} parent=5 // pred_check
        _
      $region38: #{tpu_custom_call.1} parent=5 // pred_check_branch
        %326 = sbr.rel (%p323) target = $region40
      $region39: #{tpu_custom_call.1} parent=5 // pred_region
        %s327 = ssub.s32 %s20, 1
        %s328 = sand.u32 %s63, 1
        %s329 = scalar_lea.sflag [#allocation4], %s328
        %s330 = sand.u32 %s63, 1
        %s331 = smul.addr %s330, 128
        %s332 = scalar_lea.vmem [#allocation3], %s331
        // Predicated region
        $region41: #{tpu_custom_call.1} parent=39 // pred_check
          %p333 = pneg %p76
        $region42: #{tpu_custom_call.1} parent=39 // pred_check_branch
          %335 = sbr.rel (%p333) target = $region44
        $region43: #{tpu_custom_call.1} parent=39 // pred_region
          %337 = dma.done %s329, 2048
        $region44: #{tpu_custom_call.1} parent=39 // pred_fallthru
          _
        %s338 = sand.u32 %s91, 1
        %s339 = scalar_lea.sflag [#allocation7], %s338
        %s340 = sand.u32 %s91, 1
        %s341 = smul.addr %s340, 512
        %s342 = scalar_lea.vmem [#allocation6], %s341
        // Predicated region
        $region45: #{tpu_custom_call.1} parent=39 // pred_check
          %p343 = pneg %p104
        $region46: #{tpu_custom_call.1} parent=39 // pred_check_branch
          %345 = sbr.rel (%p343) target = $region48
        $region47: #{tpu_custom_call.1} parent=39 // pred_region
          %347 = dma.done %s339, 8192
        $region48: #{tpu_custom_call.1} parent=39 // pred_fallthru
          _
        %s348 = sand.u32 %s63, 1
        %s349 = scalar_lea.sflag [#allocation4], %s348
        %s350 = sand.u32 %s63, 1
        %s351 = smul.addr %s350, 128
        %s352 = scalar_lea.vmem [#allocation3], %s351
        %p353 = pneg %p76
        %p354 = pneg %p73
        %s355 = sand.u32 %s91, 1
        %s356 = scalar_lea.sflag [#allocation7], %s355
        %s357 = sand.u32 %s91, 1
        %s358 = smul.addr %s357, 512
        %s359 = scalar_lea.vmem [#allocation6], %s358
        %p360 = pneg %p104
        %p361 = pneg %p101
        %s362 = smul.u32 2, %s33
        %p363 = scmp.lt.s32.totalorder %s362, 3
        %s364 = scalar_select %p363, %s362, 3
        %s365 = scalar_lea.vmem %s2, %s364
        %p366 = pneg %p130
        %p367 = pneg %p127
        %s368 = smul.u32 8, %s32
        %p369 = scmp.lt.s32.totalorder %s31, 1
        %s370 = scalar_select %p369, %s31, 1
        %p371 = scmp.lt.s32.totalorder %s368, 15
        %s372 = scalar_select %p371, %s368, 15
        %s373 = smul.addr %s370, 16
        %s374 = sadd.s32 %s372, %s373
        %s375 = smul.addr %s374, 8
        %s376 = scalar_lea.vmem %s3, %s375
        %p377 = pneg %p158
        %p378 = pneg %p155
        %s379 = smul.u32 2, %s33
        %p380 = scmp.lt.s32.totalorder %s31, 1
        %s381 = scalar_select %p380, %s31, 1
        %p382 = scmp.lt.s32.totalorder %s379, 3
        %s383 = scalar_select %p382, %s379, 3
        %s384 = smul.addr %s381, 4
        %s385 = sadd.s32 %s383, %s384
        %s386 = smul.addr %s385, 8
        %s387 = scalar_lea.vmem %s4, %s386
        %p388 = pneg %p186
        %p389 = pneg %p183
        %p390 = pneg %p216
        %p391 = pneg %p213
        %s392 = sand.u32 %s203, 1
        %s393 = scalar_lea.sflag [#allocation5], %s392
        %s394 = sand.u32 %s203, 1
        %s395 = smul.addr %s394, 128
        %s396 = scalar_lea.vmem [#allocation8], %s395
        %s397 = smul.u32 8, %s32
        %s398 = smul.u32 2, %s34
        %s399 = smul.u32 32, %s34
        %s400 = smul.u32 2, %s33
        %s401 = smul.u32 2, %s33
        %p402 = scmp.lt.s32.totalorder %s401, 3
        %s403 = scalar_select %p402, %s401, 3
        %s404 = scalar_lea.vmem %s2, %s403
        %s405 = smul.u32 2, %s33
        %s406 = smul.u32 8, %s32
        %p407 = scmp.lt.s32.totalorder %s31, 1
        %s408 = scalar_select %p407, %s31, 1
        %p409 = scmp.lt.s32.totalorder %s406, 15
        %s410 = scalar_select %p409, %s406, 15
        %s411 = smul.addr %s408, 16
        %s412 = sadd.s32 %s410, %s411
        %s413 = smul.addr %s412, 8
        %s414 = scalar_lea.vmem %s3, %s413
        %s415 = smul.u32 8, %s32
        %s416 = smul.u32 2, %s33
        %p417 = scmp.lt.s32.totalorder %s31, 1
        %s418 = scalar_select %p417, %s31, 1
        %p419 = scmp.lt.s32.totalorder %s416, 3
        %s420 = scalar_select %p419, %s416, 3
        %s421 = smul.addr %s418, 4
        %s422 = sadd.s32 %s420, %s421
        %s423 = smul.addr %s422, 8
        %s424 = scalar_lea.vmem %s4, %s423
        %s425 = smul.u32 2, %s33
        %s426 = smul.u32 8, %s32
        %s427 = smul.u32 2, %s33
        %p428 = scmp.eq.s32.totalorder %s34, 0
        // Predicated region
        $region49: #{tpu_custom_call.1} parent=39 // pred_check
          %p429 = pneg %p428
        $region50: #{tpu_custom_call.1} parent=39 // pred_check_branch
          %431 = sbr.rel (%p429) target = $region52
        $region51: #{tpu_custom_call.1} parent=39 // pred_region
          %432 = vst [vmem:[#allocation2] sm:$0xff] 0.0
          %433 = vst [vmem:[#allocation2 + $0x8] sm:$0xff] 0.0
          %434 = vst [vmem:[#allocation2 + $0x10] sm:$0xff] 0.0
          %435 = vst [vmem:[#allocation2 + $0x18] sm:$0xff] 0.0
          %436 = vst [vmem:[#allocation2 + $0x20] sm:$0xff] 0.0
          %437 = vst [vmem:[#allocation2 + $0x28] sm:$0xff] 0.0
          %438 = vst [vmem:[#allocation2 + $0x30] sm:$0xff] 0.0
          %439 = vst [vmem:[#allocation2 + $0x38] sm:$0xff] 0.0
          %440 = vst [vmem:[#allocation2 + $0x40] sm:$0xff] 0.0
          %441 = vst [vmem:[#allocation2 + $0x48] sm:$0xff] 0.0
          %442 = vst [vmem:[#allocation2 + $0x50] sm:$0xff] 0.0
          %443 = vst [vmem:[#allocation2 + $0x58] sm:$0xff] 0.0
          %444 = vst [vmem:[#allocation2 + $0x60] sm:$0xff] 0.0
          %445 = vst [vmem:[#allocation2 + $0x68] sm:$0xff] 0.0
          %446 = vst [vmem:[#allocation2 + $0x70] sm:$0xff] 0.0
          %447 = vst [vmem:[#allocation2 + $0x78] sm:$0xff] 0.0
        $region52: #{tpu_custom_call.1} parent=39 // pred_fallthru
          _
        %v448 = vld [vmem:[#allocation2] sm:$0xff]
        %v449 = vld [vmem:[#allocation2 + $0x8] sm:$0xff]
        %v450 = vld [vmem:[#allocation2 + $0x10] sm:$0xff]
        %v451 = vld [vmem:[#allocation2 + $0x18] sm:$0xff]
        %v452 = vld [vmem:[#allocation2 + $0x20] sm:$0xff]
        %v453 = vld [vmem:[#allocation2 + $0x28] sm:$0xff]
        %v454 = vld [vmem:[#allocation2 + $0x30] sm:$0xff]
        %v455 = vld [vmem:[#allocation2 + $0x38] sm:$0xff]
        %v456 = vld [vmem:[#allocation2 + $0x40] sm:$0xff]
        %v457 = vld [vmem:[#allocation2 + $0x48] sm:$0xff]
        %v458 = vld [vmem:[#allocation2 + $0x50] sm:$0xff]
        %v459 = vld [vmem:[#allocation2 + $0x58] sm:$0xff]
        %v460 = vld [vmem:[#allocation2 + $0x60] sm:$0xff]
        %v461 = vld [vmem:[#allocation2 + $0x68] sm:$0xff]
        %v462 = vld [vmem:[#allocation2 + $0x70] sm:$0xff]
        %v463 = vld [vmem:[#allocation2 + $0x78] sm:$0xff]
        %v464 = vld [vmem:[%s332] sm:$0xff]
        %v465 = vld [vmem:[%s332 + $0x8] sm:$0xff]
        %v466 = vld [vmem:[%s332 + $0x10] sm:$0xff]
        %v467 = vld [vmem:[%s332 + $0x18] sm:$0xff]
        %v468 = vld [vmem:[%s332 + $0x20] sm:$0xff]
        %v469 = vld [vmem:[%s332 + $0x28] sm:$0xff]
        %v470 = vld [vmem:[%s332 + $0x30] sm:$0xff]
        %v471 = vld [vmem:[%s332 + $0x38] sm:$0xff]
        %v472 = vld [vmem:[%s332 + $0x40] sm:$0xff]
        %v473 = vld [vmem:[%s332 + $0x48] sm:$0xff]
        %v474 = vld [vmem:[%s332 + $0x50] sm:$0xff]
        %v475 = vld [vmem:[%s332 + $0x58] sm:$0xff]
        %v476 = vld [vmem:[%s332 + $0x60] sm:$0xff]
        %v477 = vld [vmem:[%s332 + $0x68] sm:$0xff]
        %v478 = vld [vmem:[%s332 + $0x70] sm:$0xff]
        %v479 = vld [vmem:[%s332 + $0x78] sm:$0xff]
        %v480 = vld [vmem:[%s342] sm:$0xff]
        %v481 = vld [vmem:[%s342 + $0x8] sm:$0xff]
        %v482 = vld [vmem:[%s342 + $0x10] sm:$0xff]
        %v483 = vld [vmem:[%s342 + $0x18] sm:$0xff]
        %v484 = vld [vmem:[%s342 + $0x20] sm:$0xff]
        %v485 = vld [vmem:[%s342 + $0x28] sm:$0xff]
        %v486 = vld [vmem:[%s342 + $0x30] sm:$0xff]
        %v487 = vld [vmem:[%s342 + $0x38] sm:$0xff]
        %v488 = vld [vmem:[%s342 + $0x40] sm:$0xff]
        %v489 = vld [vmem:[%s342 + $0x48] sm:$0xff]
        %v490 = vld [vmem:[%s342 + $0x50] sm:$0xff]
        %v491 = vld [vmem:[%s342 + $0x58] sm:$0xff]
        %v492 = vld [vmem:[%s342 + $0x60] sm:$0xff]
        %v493 = vld [vmem:[%s342 + $0x68] sm:$0xff]
        %v494 = vld [vmem:[%s342 + $0x70] sm:$0xff]
        %v495 = vld [vmem:[%s342 + $0x78] sm:$0xff]
        %v496 = vld [vmem:[%s342 + $0x80] sm:$0xff]
        %v497 = vld [vmem:[%s342 + $0x88] sm:$0xff]
        %v498 = vld [vmem:[%s342 + $0x90] sm:$0xff]
        %v499 = vld [vmem:[%s342 + $0x98] sm:$0xff]
        %v500 = vld [vmem:[%s342 + $0xa0] sm:$0xff]
        %v501 = vld [vmem:[%s342 + $0xa8] sm:$0xff]
        %v502 = vld [vmem:[%s342 + $0xb0] sm:$0xff]
        %v503 = vld [vmem:[%s342 + $0xb8] sm:$0xff]
        %v504 = vld [vmem:[%s342 + $0xc0] sm:$0xff]
        %v505 = vld [vmem:[%s342 + $0xc8] sm:$0xff]
        %v506 = vld [vmem:[%s342 + $0xd0] sm:$0xff]
        %v507 = vld [vmem:[%s342 + $0xd8] sm:$0xff]
        %v508 = vld [vmem:[%s342 + $0xe0] sm:$0xff]
        %v509 = vld [vmem:[%s342 + $0xe8] sm:$0xff]
        %v510 = vld [vmem:[%s342 + $0xf0] sm:$0xff]
        %v511 = vld [vmem:[%s342 + $0xf8] sm:$0xff]
        %v512 = vld [vmem:[%s342 + $0x100] sm:$0xff]
        %v513 = vld [vmem:[%s342 + $0x108] sm:$0xff]
        %v514 = vld [vmem:[%s342 + $0x110] sm:$0xff]
        %v515 = vld [vmem:[%s342 + $0x118] sm:$0xff]
        %v516 = vld [vmem:[%s342 + $0x120] sm:$0xff]
        %v517 = vld [vmem:[%s342 + $0x128] sm:$0xff]
        %v518 = vld [vmem:[%s342 + $0x130] sm:$0xff]
        %v519 = vld [vmem:[%s342 + $0x138] sm:$0xff]
        %v520 = vld [vmem:[%s342 + $0x140] sm:$0xff]
        %v521 = vld [vmem:[%s342 + $0x148] sm:$0xff]
        %v522 = vld [vmem:[%s342 + $0x150] sm:$0xff]
        %v523 = vld [vmem:[%s342 + $0x158] sm:$0xff]
        %v524 = vld [vmem:[%s342 + $0x160] sm:$0xff]
        %v525 = vld [vmem:[%s342 + $0x168] sm:$0xff]
        %v526 = vld [vmem:[%s342 + $0x170] sm:$0xff]
        %v527 = vld [vmem:[%s342 + $0x178] sm:$0xff]
        %v528 = vld [vmem:[%s342 + $0x180] sm:$0xff]
        %v529 = vld [vmem:[%s342 + $0x188] sm:$0xff]
        %v530 = vld [vmem:[%s342 + $0x190] sm:$0xff]
        %v531 = vld [vmem:[%s342 + $0x198] sm:$0xff]
        %v532 = vld [vmem:[%s342 + $0x1a0] sm:$0xff]
        %v533 = vld [vmem:[%s342 + $0x1a8] sm:$0xff]
        %v534 = vld [vmem:[%s342 + $0x1b0] sm:$0xff]
        %v535 = vld [vmem:[%s342 + $0x1b8] sm:$0xff]
        %v536 = vld [vmem:[%s342 + $0x1c0] sm:$0xff]
        %v537 = vld [vmem:[%s342 + $0x1c8] sm:$0xff]
        %v538 = vld [vmem:[%s342 + $0x1d0] sm:$0xff]
        %v539 = vld [vmem:[%s342 + $0x1d8] sm:$0xff]
        %v540 = vld [vmem:[%s342 + $0x1e0] sm:$0xff]
        %v541 = vld [vmem:[%s342 + $0x1e8] sm:$0xff]
        %v542 = vld [vmem:[%s342 + $0x1f0] sm:$0xff]
        %v543 = vld [vmem:[%s342 + $0x1f8] sm:$0xff]
        %544 = vmatpush.msra.mxu0 %v510
        %545 = vmatpush.msra.mxu0 %v508
        %546 = vmatpush.msra.mxu0 %v506
        %547 = vmatpush.msra.mxu0 %v504
        %548 = vmatpush.msra.mxu0 %v502
        %549 = vmatpush.msra.mxu0 %v500
        %550 = vmatpush.msra.mxu0 %v498
        %551 = vmatpush.msra.mxu0 %v496
        %552 = vmatpush.msra.mxu0 %v494
        %553 = vmatpush.msra.mxu0 %v492
        %554 = vmatpush.msra.mxu0 %v490
        %555 = vmatpush.msra.mxu0 %v488
        %556 = vmatpush.msra.mxu0 %v486
        %557 = vmatpush.msra.mxu0 %v484
        %558 = vmatpush.msra.mxu0 %v482
        %559 = vmatpush.msra.mxu0 %v480
        %560 = vmatmul.f32.gmra.mxu0 %v464
        %v561 = vpop.f32.mrf.mxu0
        %v562 = vadd.f32 0.0, %v561
        %563 = vmatmul.f32.gmra.mxu0 %v466
        %v564 = vpop.f32.mrf.mxu0
        %v565 = vadd.f32 0.0, %v564
        %566 = vmatmul.f32.gmra.mxu0 %v468
        %v567 = vpop.f32.mrf.mxu0
        %v568 = vadd.f32 0.0, %v567
        %569 = vmatmul.f32.gmra.mxu0 %v470
        %v570 = vpop.f32.mrf.mxu0
        %v571 = vadd.f32 0.0, %v570
        %572 = vmatmul.f32.gmra.mxu0 %v472
        %v573 = vpop.f32.mrf.mxu0
        %v574 = vadd.f32 0.0, %v573
        %575 = vmatmul.f32.gmra.mxu0 %v474
        %v576 = vpop.f32.mrf.mxu0
        %v577 = vadd.f32 0.0, %v576
        %578 = vmatmul.f32.gmra.mxu0 %v476
        %v579 = vpop.f32.mrf.mxu0
        %v580 = vadd.f32 0.0, %v579
        %581 = vmatmul.f32.gmra.mxu0 %v478
        %v582 = vpop.f32.mrf.mxu0
        %v583 = vadd.f32 0.0, %v582
        %584 = vdwg.mxu0
        %585 = vmatpush.msra.mxu0 %v542
        %586 = vmatpush.msra.mxu0 %v540
        %587 = vmatpush.msra.mxu0 %v538
        %588 = vmatpush.msra.mxu0 %v536
        %589 = vmatpush.msra.mxu0 %v534
        %590 = vmatpush.msra.mxu0 %v532
        %591 = vmatpush.msra.mxu0 %v530
        %592 = vmatpush.msra.mxu0 %v528
        %593 = vmatpush.msra.mxu0 %v526
        %594 = vmatpush.msra.mxu0 %v524
        %595 = vmatpush.msra.mxu0 %v522
        %596 = vmatpush.msra.mxu0 %v520
        %597 = vmatpush.msra.mxu0 %v518
        %598 = vmatpush.msra.mxu0 %v516
        %599 = vmatpush.msra.mxu0 %v514
        %600 = vmatpush.msra.mxu0 %v512
        %601 = vmatmul.f32.gmra.mxu0 %v465
        %v602 = vpop.f32.mrf.mxu0
        %v603 = vadd.f32 %v562, %v602
        %604 = vmatmul.f32.gmra.mxu0 %v467
        %v605 = vpop.f32.mrf.mxu0
        %v606 = vadd.f32 %v565, %v605
        %607 = vmatmul.f32.gmra.mxu0 %v469
        %v608 = vpop.f32.mrf.mxu0
        %v609 = vadd.f32 %v568, %v608
        %610 = vmatmul.f32.gmra.mxu0 %v471
        %v611 = vpop.f32.mrf.mxu0
        %v612 = vadd.f32 %v571, %v611
        %613 = vmatmul.f32.gmra.mxu0 %v473
        %v614 = vpop.f32.mrf.mxu0
        %v615 = vadd.f32 %v574, %v614
        %616 = vmatmul.f32.gmra.mxu0 %v475
        %v617 = vpop.f32.mrf.mxu0
        %v618 = vadd.f32 %v577, %v617
        %619 = vmatmul.f32.gmra.mxu0 %v477
        %v620 = vpop.f32.mrf.mxu0
        %v621 = vadd.f32 %v580, %v620
        %622 = vmatmul.f32.gmra.mxu0 %v479
        %v623 = vpop.f32.mrf.mxu0
        %v624 = vadd.f32 %v583, %v623
        %625 = vdwg.mxu0
        %626 = vmatpush.msra.mxu0 %v511
        %627 = vmatpush.msra.mxu0 %v509
        %628 = vmatpush.msra.mxu0 %v507
        %629 = vmatpush.msra.mxu0 %v505
        %630 = vmatpush.msra.mxu0 %v503
        %631 = vmatpush.msra.mxu0 %v501
        %632 = vmatpush.msra.mxu0 %v499
        %633 = vmatpush.msra.mxu0 %v497
        %634 = vmatpush.msra.mxu0 %v495
        %635 = vmatpush.msra.mxu0 %v493
        %636 = vmatpush.msra.mxu0 %v491
        %637 = vmatpush.msra.mxu0 %v489
        %638 = vmatpush.msra.mxu0 %v487
        %639 = vmatpush.msra.mxu0 %v485
        %640 = vmatpush.msra.mxu0 %v483
        %641 = vmatpush.msra.mxu0 %v481
        %642 = vmatmul.f32.gmra.mxu0 %v464
        %v643 = vpop.f32.mrf.mxu0
        %v644 = vadd.f32 0.0, %v643
        %645 = vmatmul.f32.gmra.mxu0 %v466
        %v646 = vpop.f32.mrf.mxu0
        %v647 = vadd.f32 0.0, %v646
        %648 = vmatmul.f32.gmra.mxu0 %v468
        %v649 = vpop.f32.mrf.mxu0
        %v650 = vadd.f32 0.0, %v649
        %651 = vmatmul.f32.gmra.mxu0 %v470
        %v652 = vpop.f32.mrf.mxu0
        %v653 = vadd.f32 0.0, %v652
        %654 = vmatmul.f32.gmra.mxu0 %v472
        %v655 = vpop.f32.mrf.mxu0
        %v656 = vadd.f32 0.0, %v655
        %657 = vmatmul.f32.gmra.mxu0 %v474
        %v658 = vpop.f32.mrf.mxu0
        %v659 = vadd.f32 0.0, %v658
        %660 = vmatmul.f32.gmra.mxu0 %v476
        %v661 = vpop.f32.mrf.mxu0
        %v662 = vadd.f32 0.0, %v661
        %663 = vmatmul.f32.gmra.mxu0 %v478
        %v664 = vpop.f32.mrf.mxu0
        %v665 = vadd.f32 0.0, %v664
        %666 = vdwg.mxu0
        %667 = vmatpush.msra.mxu0 %v543
        %668 = vmatpush.msra.mxu0 %v541
        %669 = vmatpush.msra.mxu0 %v539
        %670 = vmatpush.msra.mxu0 %v537
        %671 = vmatpush.msra.mxu0 %v535
        %672 = vmatpush.msra.mxu0 %v533
        %673 = vmatpush.msra.mxu0 %v531
        %674 = vmatpush.msra.mxu0 %v529
        %675 = vmatpush.msra.mxu0 %v527
        %676 = vmatpush.msra.mxu0 %v525
        %677 = vmatpush.msra.mxu0 %v523
        %678 = vmatpush.msra.mxu0 %v521
        %679 = vmatpush.msra.mxu0 %v519
        %680 = vmatpush.msra.mxu0 %v517
        %681 = vmatpush.msra.mxu0 %v515
        %682 = vmatpush.msra.mxu0 %v513
        %683 = vmatmul.f32.gmra.mxu0 %v465
        %v684 = vpop.f32.mrf.mxu0
        %v685 = vadd.f32 %v644, %v684
        %686 = vmatmul.f32.gmra.mxu0 %v467
        %v687 = vpop.f32.mrf.mxu0
        %v688 = vadd.f32 %v647, %v687
        %689 = vmatmul.f32.gmra.mxu0 %v469
        %v690 = vpop.f32.mrf.mxu0
        %v691 = vadd.f32 %v650, %v690
        %692 = vmatmul.f32.gmra.mxu0 %v471
        %v693 = vpop.f32.mrf.mxu0
        %v694 = vadd.f32 %v653, %v693
        %695 = vmatmul.f32.gmra.mxu0 %v473
        %v696 = vpop.f32.mrf.mxu0
        %v697 = vadd.f32 %v656, %v696
        %698 = vmatmul.f32.gmra.mxu0 %v475
        %v699 = vpop.f32.mrf.mxu0
        %v700 = vadd.f32 %v659, %v699
        %701 = vmatmul.f32.gmra.mxu0 %v477
        %v702 = vpop.f32.mrf.mxu0
        %v703 = vadd.f32 %v662, %v702
        %704 = vmatmul.f32.gmra.mxu0 %v479
        %v705 = vpop.f32.mrf.mxu0
        %v706 = vadd.f32 %v665, %v705
        %707 = vdwg.mxu0
        %v708 = vadd.f32 %v448, %v603
        %v709 = vadd.f32 %v449, %v685
        %v710 = vadd.f32 %v450, %v606
        %v711 = vadd.f32 %v451, %v688
        %v712 = vadd.f32 %v452, %v609
        %v713 = vadd.f32 %v453, %v691
        %v714 = vadd.f32 %v454, %v612
        %v715 = vadd.f32 %v455, %v694
        %v716 = vadd.f32 %v456, %v615
        %v717 = vadd.f32 %v457, %v697
        %v718 = vadd.f32 %v458, %v618
        %v719 = vadd.f32 %v459, %v700
        %v720 = vadd.f32 %v460, %v621
        %v721 = vadd.f32 %v461, %v703
        %v722 = vadd.f32 %v462, %v624
        %v723 = vadd.f32 %v463, %v706
        %724 = vst [vmem:[#allocation2] sm:$0xff] %v708
        %725 = vst [vmem:[#allocation2 + $0x8] sm:$0xff] %v709
        %726 = vst [vmem:[#allocation2 + $0x10] sm:$0xff] %v710
        %727 = vst [vmem:[#allocation2 + $0x18] sm:$0xff] %v711
        %728 = vst [vmem:[#allocation2 + $0x20] sm:$0xff] %v712
        %729 = vst [vmem:[#allocation2 + $0x28] sm:$0xff] %v713
        %730 = vst [vmem:[#allocation2 + $0x30] sm:$0xff] %v714
        %731 = vst [vmem:[#allocation2 + $0x38] sm:$0xff] %v715
        %732 = vst [vmem:[#allocation2 + $0x40] sm:$0xff] %v716
        %733 = vst [vmem:[#allocation2 + $0x48] sm:$0xff] %v717
        %734 = vst [vmem:[#allocation2 + $0x50] sm:$0xff] %v718
        %735 = vst [vmem:[#allocation2 + $0x58] sm:$0xff] %v719
        %736 = vst [vmem:[#allocation2 + $0x60] sm:$0xff] %v720
        %737 = vst [vmem:[#allocation2 + $0x68] sm:$0xff] %v721
        %738 = vst [vmem:[#allocation2 + $0x70] sm:$0xff] %v722
        %739 = vst [vmem:[#allocation2 + $0x78] sm:$0xff] %v723
        %p740 = scmp.eq.s32.totalorder %s34, 1
        // Predicated region
        $region53: #{tpu_custom_call.1} parent=39 // pred_check
          %p741 = pneg %p740
        $region54: #{tpu_custom_call.1} parent=39 // pred_check_branch
          %743 = sbr.rel (%p741) target = $region56
        $region55: #{tpu_custom_call.1} parent=39 // pred_region
          %v744 = vld [vmem:[%s414] sm:$0xff]
          %v745 = vld [vmem:[%s414 + $0x8] sm:$0xff]
          %v746 = vld [vmem:[%s414 + $0x10] sm:$0xff]
          %v747 = vld [vmem:[%s414 + $0x18] sm:$0xff]
          %v748 = vld [vmem:[%s414 + $0x20] sm:$0xff]
          %v749 = vld [vmem:[%s414 + $0x28] sm:$0xff]
          %v750 = vld [vmem:[%s414 + $0x30] sm:$0xff]
          %v751 = vld [vmem:[%s414 + $0x38] sm:$0xff]
          %v752 = vld [vmem:[%s424] sm:$0xff]
          %v753 = vld [vmem:[%s424 + $0x8] sm:$0xff]
          %vm754 = vcmask 64512
          %v756 = vsel %vm754, %v744, 0
          %v759 = vsel %vm754, %v745, 0
          %v762 = vsel %vm754, %v746, 0
          %v765 = vsel %vm754, %v747, 0
          %v768 = vsel %vm754, %v748, 0
          %v771 = vsel %vm754, %v749, 0
          %v774 = vsel %vm754, %v750, 0
          %v777 = vsel %vm754, %v751, 0
          %779 = vmatpush.msra.mxu0 0.0
          %780 = vmatpush.msra.mxu0 0.0
          %781 = vmatpush.msra.mxu0 0.0
          %782 = vmatpush.msra.mxu0 0.0
          %783 = vmatpush.msra.mxu0 0.0
          %784 = vmatpush.msra.mxu0 0.0
          %785 = vmatpush.msra.mxu0 0.0
          %786 = vmatpush.msra.mxu0 0.0
          %787 = vmatpush.msra.mxu0 0.0
          %788 = vmatpush.msra.mxu0 0.0
          %789 = vmatpush.msra.mxu0 0.0
          %790 = vmatpush.msra.mxu0 0.0
          %791 = vmatpush.msra.mxu0 0.0
          %792 = vmatpush.msra.mxu0 0.0
          %793 = vmatpush.msra.mxu0 0.0
          %794 = vmatpush.msra.mxu0 %v752
          %795 = vmatmul.f32.gmra.mxu0 %v756
          %v796 = vpop.f32.mrf.mxu0
          %v797 = vadd.f32 0.0, %v796
          %798 = vmatmul.f32.gmra.mxu0 %v759
          %v799 = vpop.f32.mrf.mxu0
          %v800 = vadd.f32 0.0, %v799
          %801 = vmatmul.f32.gmra.mxu0 %v762
          %v802 = vpop.f32.mrf.mxu0
          %v803 = vadd.f32 0.0, %v802
          %804 = vmatmul.f32.gmra.mxu0 %v765
          %v805 = vpop.f32.mrf.mxu0
          %v806 = vadd.f32 0.0, %v805
          %807 = vmatmul.f32.gmra.mxu0 %v768
          %v808 = vpop.f32.mrf.mxu0
          %v809 = vadd.f32 0.0, %v808
          %810 = vmatmul.f32.gmra.mxu0 %v771
          %v811 = vpop.f32.mrf.mxu0
          %v812 = vadd.f32 0.0, %v811
          %813 = vmatmul.f32.gmra.mxu0 %v774
          %v814 = vpop.f32.mrf.mxu0
          %v815 = vadd.f32 0.0, %v814
          %816 = vmatmul.f32.gmra.mxu0 %v777
          %v817 = vpop.f32.mrf.mxu0
          %v818 = vadd.f32 0.0, %v817
          %819 = vdwg.mxu0
          %820 = vmatpush.msra.mxu0 0.0
          %821 = vmatpush.msra.mxu0 0.0
          %822 = vmatpush.msra.mxu0 0.0
          %823 = vmatpush.msra.mxu0 0.0
          %824 = vmatpush.msra.mxu0 0.0
          %825 = vmatpush.msra.mxu0 0.0
          %826 = vmatpush.msra.mxu0 0.0
          %827 = vmatpush.msra.mxu0 0.0
          %828 = vmatpush.msra.mxu0 0.0
          %829 = vmatpush.msra.mxu0 0.0
          %830 = vmatpush.msra.mxu0 0.0
          %831 = vmatpush.msra.mxu0 0.0
          %832 = vmatpush.msra.mxu0 0.0
          %833 = vmatpush.msra.mxu0 0.0
          %834 = vmatpush.msra.mxu0 0.0
          %835 = vmatpush.msra.mxu0 %v753
          %836 = vmatmul.f32.gmra.mxu0 %v756
          %v837 = vpop.f32.mrf.mxu0
          %v838 = vadd.f32 0.0, %v837
          %839 = vmatmul.f32.gmra.mxu0 %v759
          %v840 = vpop.f32.mrf.mxu0
          %v841 = vadd.f32 0.0, %v840
          %842 = vmatmul.f32.gmra.mxu0 %v762
          %v843 = vpop.f32.mrf.mxu0
          %v844 = vadd.f32 0.0, %v843
          %845 = vmatmul.f32.gmra.mxu0 %v765
          %v846 = vpop.f32.mrf.mxu0
          %v847 = vadd.f32 0.0, %v846
          %848 = vmatmul.f32.gmra.mxu0 %v768
          %v849 = vpop.f32.mrf.mxu0
          %v850 = vadd.f32 0.0, %v849
          %851 = vmatmul.f32.gmra.mxu0 %v771
          %v852 = vpop.f32.mrf.mxu0
          %v853 = vadd.f32 0.0, %v852
          %854 = vmatmul.f32.gmra.mxu0 %v774
          %v855 = vpop.f32.mrf.mxu0
          %v856 = vadd.f32 0.0, %v855
          %857 = vmatmul.f32.gmra.mxu0 %v777
          %v858 = vpop.f32.mrf.mxu0
          %v859 = vadd.f32 0.0, %v858
          %860 = vdwg.mxu0
          %v861 = vld [vmem:[#allocation2] sm:$0xff]
          %v862 = vld [vmem:[#allocation2 + $0x8] sm:$0xff]
          %v863 = vld [vmem:[#allocation2 + $0x10] sm:$0xff]
          %v864 = vld [vmem:[#allocation2 + $0x18] sm:$0xff]
          %v865 = vld [vmem:[#allocation2 + $0x20] sm:$0xff]
          %v866 = vld [vmem:[#allocation2 + $0x28] sm:$0xff]
          %v867 = vld [vmem:[#allocation2 + $0x30] sm:$0xff]
          %v868 = vld [vmem:[#allocation2 + $0x38] sm:$0xff]
          %v869 = vld [vmem:[#allocation2 + $0x40] sm:$0xff]
          %v870 = vld [vmem:[#allocation2 + $0x48] sm:$0xff]
          %v871 = vld [vmem:[#allocation2 + $0x50] sm:$0xff]
          %v872 = vld [vmem:[#allocation2 + $0x58] sm:$0xff]
          %v873 = vld [vmem:[#allocation2 + $0x60] sm:$0xff]
          %v874 = vld [vmem:[#allocation2 + $0x68] sm:$0xff]
          %v875 = vld [vmem:[#allocation2 + $0x70] sm:$0xff]
          %v876 = vld [vmem:[#allocation2 + $0x78] sm:$0xff]
          %v877 = vld [vmem:[%s404] sm:$0x3]
          %v879 = vperm.slane %v877, 0
          %v880 = vperm.slane %v877, 1
          %v883 = vadd.f32 %v861, %v879
          %v884 = vadd.f32 %v862, %v880
          %v885 = vadd.f32 %v863, %v879
          %v886 = vadd.f32 %v864, %v880
          %v887 = vadd.f32 %v865, %v879
          %v888 = vadd.f32 %v866, %v880
          %v889 = vadd.f32 %v867, %v879
          %v890 = vadd.f32 %v868, %v880
          %v891 = vadd.f32 %v869, %v879
          %v892 = vadd.f32 %v870, %v880
          %v893 = vadd.f32 %v871, %v879
          %v894 = vadd.f32 %v872, %v880
          %v895 = vadd.f32 %v873, %v879
          %v896 = vadd.f32 %v874, %v880
          %v897 = vadd.f32 %v875, %v879
          %v898 = vadd.f32 %v876, %v880
          %v899 = vadd.f32 %v883, %v797
          %v900 = vadd.f32 %v884, %v838
          %v901 = vadd.f32 %v885, %v800
          %v902 = vadd.f32 %v886, %v841
          %v903 = vadd.f32 %v887, %v803
          %v904 = vadd.f32 %v888, %v844
          %v905 = vadd.f32 %v889, %v806
          %v906 = vadd.f32 %v890, %v847
          %v907 = vadd.f32 %v891, %v809
          %v908 = vadd.f32 %v892, %v850
          %v909 = vadd.f32 %v893, %v812
          %v910 = vadd.f32 %v894, %v853
          %v911 = vadd.f32 %v895, %v815
          %v912 = vadd.f32 %v896, %v856
          %v913 = vadd.f32 %v897, %v818
          %v914 = vadd.f32 %v898, %v859
          %915 = vst [vmem:[%s396] sm:$0xff] %v899
          %916 = vst [vmem:[%s396 + $0x8] sm:$0xff] %v900
          %917 = vst [vmem:[%s396 + $0x10] sm:$0xff] %v901
          %918 = vst [vmem:[%s396 + $0x18] sm:$0xff] %v902
          %919 = vst [vmem:[%s396 + $0x20] sm:$0xff] %v903
          %920 = vst [vmem:[%s396 + $0x28] sm:$0xff] %v904
          %921 = vst [vmem:[%s396 + $0x30] sm:$0xff] %v905
          %922 = vst [vmem:[%s396 + $0x38] sm:$0xff] %v906
          %923 = vst [vmem:[%s396 + $0x40] sm:$0xff] %v907
          %924 = vst [vmem:[%s396 + $0x48] sm:$0xff] %v908
          %925 = vst [vmem:[%s396 + $0x50] sm:$0xff] %v909
          %926 = vst [vmem:[%s396 + $0x58] sm:$0xff] %v910
          %927 = vst [vmem:[%s396 + $0x60] sm:$0xff] %v911
          %928 = vst [vmem:[%s396 + $0x68] sm:$0xff] %v912
          %929 = vst [vmem:[%s396 + $0x70] sm:$0xff] %v913
          %930 = vst [vmem:[%s396 + $0x78] sm:$0xff] %v914
        $region56: #{tpu_custom_call.1} parent=39 // pred_fallthru
          _
        %s931 = sand.u32 %s203, 1
        %s932 = scalar_lea.sflag [#allocation5], %s931
        %s933 = sand.u32 %s203, 1
        %s934 = smul.addr %s933, 128
        %s935 = scalar_lea.vmem [#allocation8], %s934
        // Predicated region
        $region57: #{tpu_custom_call.1} parent=39 // pred_check
          %p936 = pneg %p213
        $region58: #{tpu_custom_call.1} parent=39 // pred_check_branch
          %938 = sbr.rel (%p936) target = $region60
        $region59: #{tpu_custom_call.1} parent=39 // pred_region
          %s939 = smul.u32 8, %s32
          %s940 = smul.u32 2, %s33
          %942 = vsyncadd %s932, 0
          %s943 = smul.addr %s939, 4
          %s944 = sadd.s32 %s940, %s943
          %s945 = smul.addr %s31, 64
          %s946 = sadd.s32 %s944, %s945
          %s947 = smul.addr %s946, 8
          %s948 = scalar_lea.hbm %s5, %s947
          %s949 = sshll.u32 %s935, 4
          %s950 = int_to_ptr.vmem [resolvable:$true] %s949
          %s951 = sshll.u32 %s948, 4
          %s952 = int_to_ptr.hbm [resolvable:$true] %s951
          %957 = dma.vmem_to_hbm [thread:$0]  %s950, 2048, %s952, %s932, 256, 512, 16
        $region60: #{tpu_custom_call.1} parent=39 // pred_fallthru
          _
      $region40: #{tpu_custom_call.1} parent=5 // pred_fallthru
        _
      %p958 = scmp.le.s32.totalorder 2, %s20
      // Predicated region
      $region61: #{tpu_custom_call.1} parent=5 // pred_check
        %p959 = pneg %p958
      $region62: #{tpu_custom_call.1} parent=5 // pred_check_branch
        %961 = sbr.rel (%p959) target = $region64
      $region63: #{tpu_custom_call.1} parent=5 // pred_region
        %s962 = ssub.s32 %s20, 2
        // Predicated region
        $region65: #{tpu_custom_call.1} parent=63 // pred_check
          %p963 = pneg %p219
        $region66: #{tpu_custom_call.1} parent=63 // pred_check_branch
          %965 = sbr.rel (%p963) target = $region68
        $region67: #{tpu_custom_call.1} parent=63 // pred_region
          %s966 = sand.u32 %s204, 1
          %s967 = scalar_lea.sflag [#allocation5], %s966
          %s968 = sand.u32 %s204, 1
          %s969 = smul.addr %s968, 128
          %s970 = scalar_lea.vmem [#allocation8], %s969
          %972 = dma.done %s967, 2048
        $region68: #{tpu_custom_call.1} parent=63 // pred_fallthru
          _
      $region64: #{tpu_custom_call.1} parent=5 // pred_fallthru
        _
    $region6: #{tpu_custom_call.1} parent=1 // loop_footer
      %s24 = sadd.s32 1, %s20
    $region7: #{tpu_custom_call.1} parent=1 // loop_footer_branch
      %19 = sbr.rel target = $region3
    $region8: #{tpu_custom_call.1} parent=1 // loop_exit
      _
    %973 = vsyncpa [#allocation4], 1
    %s974 = scalar_lea.sflag [#allocation4], 1
    %975 = vsyncpa %s974, 1
    %976 = vsyncpa [#allocation7], 1
    %s977 = scalar_lea.sflag [#allocation7], 1
    %978 = vsyncpa %s977, 1
    %979 = vsyncpa [#allocation5], 1
    %s980 = scalar_lea.sflag [#allocation5], 1
    %981 = vsyncpa %s980, 1

</llo_original>
